<compile_context>
chip_gen: v5e
topology: v5e:2x2
jax: 0.10.0
libtpu: 0.0.40
codegen_flags: <defaults>
</compile_context>

<pallas_src>
import functools

import jax
import jax.numpy as jnp
import numpy as np
from jax.experimental import pallas as pl
from jax.experimental.pallas import tpu as pltpu

BN_EPS = 1e-5
_NEG_INF = float("-inf")
_HIGHEST = jax.lax.Precision.HIGHEST  # reference only


def _round_up(x, m):
    return ((x + m - 1) // m) * m


@functools.lru_cache(maxsize=None)
def _vmem_limit_bytes():
    """Scoped-VMEM request: ~96 MiB on 128 MiB parts (v5e/v6e), ~48 MiB on v7x."""
    phys = 64 << 20  # conservative (v7x-sized) fallback
    try:
        cap = int(getattr(pltpu.get_tpu_info(), "vmem_capacity_bytes", 0) or 0)
        if cap > 0:
            phys = cap
    except Exception:
        pass
    return int(min(phys * 3 // 4, 100 << 20))


def _pick_lane_tile(m, np_, tk, has_res, budget_bytes):
    """Largest lane tile whose double-buffered working set fits the budget."""
    m128 = max(128, _round_up(m, 128))
    for tm in (2048, 1024, 512, 256, 128):
        if tm > m128:
            continue
        ws = (2 * (np_ * tk * 2          # W block (bf16)
                   + np_ * 4             # bias block (f32)
                   + tk * tm * 2         # X block (bf16)
                   + (np_ * tm * 2 if has_res else 0)
                   + np_ * tm * 2)       # out block (bf16)
              + np_ * tm * 4)            # f32 accumulator scratch
        if ws > budget_bytes:
            continue
        steps = -(-m128 // tm)
        if steps < 2 and m128 > 256 and tm > 256:
            # prefer >=2 parallel M steps (pipelining; megacore on v7x)
            continue
        return tm
    return 128


# ---------------------------------------------------------------------------
# Fused GEMM kernel:  out = [relu]( act(W @ X + b) [+ residual] )
#   W: (N, K) bf16   X: (K, M) bf16   b: (N, 1) f32   residual/out: (N, M)
# Grid = (M tiles ["parallel"], K tiles ["arbitrary"]); f32 VMEM accumulator.
# ---------------------------------------------------------------------------
def _make_gemm_kernel(act, has_residual, relu_out):
    def kernel(*refs):
        if has_residual:
            w_ref, b_ref, x_ref, r_ref, o_ref, acc_ref = refs
        else:
            w_ref, b_ref, x_ref, o_ref, acc_ref = refs
        k = pl.program_id(1)

        @pl.when(k == 0)
        def _():
            acc_ref[...] = jnp.zeros_like(acc_ref)

        acc_ref[...] += jnp.dot(w_ref[...], x_ref[...],
                                preferred_element_type=jnp.float32)   # MXU

        @pl.when(k == pl.num_programs(1) - 1)
        def _():
            y = acc_ref[...] + b_ref[...]                 # (N,1) lane broadcast
            if act == "silu":
                # sigmoid via EUP exp + approx reciprocal (frees VALU slots)
                y = y * pl.reciprocal(1.0 + jnp.exp(-y), approx=True)
            if has_residual:
                y = y + r_ref[...].astype(jnp.float32)
            if relu_out:
                y = jnp.maximum(y, 0.0)
            o_ref[...] = y.astype(o_ref.dtype)            # single lane-dense store

    return kernel


def fused_gemm(w2, b, x2, residual=None, act="none", relu_out=False,
               out_dtype=jnp.bfloat16):
    """w2: (N, K), b: (N,), x2: (K, M) [, residual: (N, M)] -> (N, M)."""
    n, k = w2.shape
    _, m = x2.shape
    np_ = _round_up(n, 16)                 # bf16 sublane-packing friendly
    kp = _round_up(k, 16)
    if kp > 512:                           # tile K so VMEM stays bounded
        tk = 512
        kp = _round_up(k, tk)
    else:
        tk = kp

    has_res = residual is not None
    vmem_limit = _vmem_limit_bytes()
    tm = _pick_lane_tile(m, np_, tk, has_res, (vmem_limit * 3) // 4)
    mp = _round_up(max(m, tm), tm)

    w2p = jnp.pad(w2.astype(jnp.bfloat16), ((0, np_ - n), (0, kp - k)))
    bp = jnp.pad(b.astype(jnp.float32), (0, np_ - n)).reshape(np_, 1)
    x2p = jnp.pad(x2.astype(jnp.bfloat16), ((0, kp - k), (0, mp - m)))

    args = [w2p, bp, x2p]
    in_specs = [
        pl.BlockSpec((np_, tk), lambda i, kk: (0, kk)),
        pl.BlockSpec((np_, 1), lambda i, kk: (0, 0)),
        pl.BlockSpec((tk, tm), lambda i, kk: (kk, i)),
    ]
    if has_res:
        rp = jnp.pad(residual.astype(jnp.bfloat16), ((0, np_ - n), (0, mp - m)))
        args.append(rp)
        in_specs.append(pl.BlockSpec((np_, tm), lambda i, kk: (0, i)))

    out = pl.pallas_call(
        _make_gemm_kernel(act, has_res, relu_out),
        out_shape=jax.ShapeDtypeStruct((np_, mp), out_dtype),
        grid_spec=pltpu.PrefetchScalarGridSpec(
            num_scalar_prefetch=0,
            grid=(mp // tm, kp // tk),
            in_specs=in_specs,
            out_specs=pl.BlockSpec((np_, tm), lambda i, kk: (0, i)),
            scratch_shapes=[pltpu.VMEM((np_, tm), jnp.float32)],
        ),
        compiler_params=pltpu.CompilerParams(
            dimension_semantics=("parallel", "arbitrary"),
            vmem_limit_bytes=vmem_limit),
    )(*args)
    return out[:n, :m]


# ---------------------------------------------------------------------------
# Elementwise max over T shifted windows (VPU), lane-dense.
# ---------------------------------------------------------------------------
def _winmax_kernel(n_win, p_ref, o_ref):
    acc = p_ref[0]
    for t in range(1, n_win):
        acc = jnp.maximum(acc, p_ref[t])
    o_ref[...] = acc


def _pool_lane_tile(m, bytes_per_lane, budget_bytes):
    m128 = max(128, _round_up(m, 128))
    for tm in (2048, 1024, 512, 256, 128):
        if tm <= m128 and bytes_per_lane * tm <= budget_bytes:
            return tm
    return 128


def _window_max_pallas(wins):
    """wins: (T, C, M) -> (C, M) elementwise max over the T windows."""
    t, c, m = wins.shape
    cp = _round_up(c, 16)
    itemsize = jnp.dtype(wins.dtype).itemsize
    vmem_limit = _vmem_limit_bytes()
    tm = _pool_lane_tile(m, 2 * (t + 1) * cp * itemsize, (vmem_limit * 3) // 4)
    mp = _round_up(max(m, tm), tm)
    wp = jnp.pad(wins, ((0, 0), (0, cp - c), (0, mp - m)),
                 constant_values=_NEG_INF)
    out = pl.pallas_call(
        functools.partial(_winmax_kernel, t),
        out_shape=jax.ShapeDtypeStruct((cp, mp), wins.dtype),
        grid_spec=pltpu.PrefetchScalarGridSpec(
            num_scalar_prefetch=0,
            grid=(mp // tm,),
            in_specs=[pl.BlockSpec((t, cp, tm), lambda i: (0, 0, i))],
            out_specs=pl.BlockSpec((cp, tm), lambda i: (0, i)),
        ),
        compiler_params=pltpu.CompilerParams(
            dimension_semantics=("parallel",),
            vmem_limit_bytes=vmem_limit),
    )(wp)
    return out[:c, :m]


def maxpool_3x3_s2_p1_cbhw(y):
    """nn.MaxPool2d(3, stride=2, padding=1), separable, on (C, B, H, W) input."""
    c, b, h, w = y.shape
    # width pass: 1x3 max, stride 2
    wo = (w + 2 - 3) // 2 + 1
    yp = jnp.pad(y, ((0, 0), (0, 0), (0, 0), (1, 1)), constant_values=_NEG_INF)
    wins = jnp.stack(
        [yp[:, :, :, dw:dw + 2 * (wo - 1) + 1:2] for dw in range(3)], axis=0
    ).reshape(3, c, b * h * wo)
    y1 = _window_max_pallas(wins).reshape(c, b, h, wo)
    # height pass: 3x1 max, stride 2
    ho = (h + 2 - 3) // 2 + 1
    yp = jnp.pad(y1, ((0, 0), (0, 0), (1, 1), (0, 0)), constant_values=_NEG_INF)
    wins = jnp.stack(
        [yp[:, :, dh:dh + 2 * (ho - 1) + 1:2, :] for dh in range(3)], axis=0
    ).reshape(3, c, b * ho * wo)
    return _window_max_pallas(wins).reshape(c, b, ho, wo)


# ---------------------------------------------------------------------------
# Conv(k,s) + folded BatchNorm (+ SiLU) (+ residual + ReLU), (C,B,H,W) layout.
# ---------------------------------------------------------------------------
def fold_bn(p, eps=BN_EPS):
    scale = p["gamma"] / jnp.sqrt(p["var"] + eps)
    w = p["w"] * scale[:, None, None, None]
    b = p["beta"] - p["mean"] * scale
    return w, b


def conv_bn_cbhw(x, p, stride=1, act="none", residual=None, relu_out=False):
    """Ultralytics Conv (Conv2d bias=False + BN [+SiLU]) on (C, B, H, W) input.

    Wrapper does only padding / tap-slicing / reshapes (no transposes, no
    FLOPs); MACs, bias, SiLU, residual add and ReLU run in the fused GEMM.
    """
    w, bias = fold_bn(p)
    cout, cin, kh, kw = w.shape
    _, b, h, wdim = x.shape
    pad = kh // 2

    if kh == 1:
        xs = x[:, :, ::stride, ::stride]
        ho, wo = xs.shape[2], xs.shape[3]
        cols = xs.reshape(cin, b * ho * wo)
        w2 = w.reshape(cout, cin)
    else:
        xp = jnp.pad(x, ((0, 0), (0, 0), (pad, pad), (pad, pad)))
        hp, wp = h + 2 * pad, wdim + 2 * pad
        ho = (hp - kh) // stride + 1
        wo = (wp - kw) // stride + 1
        # TODO(synk): stream these k*k taps as K-axis shifted windows of the
        # single padded buffer inside the kernel (avoid im2col HBM traffic).
        taps = []
        for dh in range(kh):
            for dw in range(kw):
                taps.append(xp[:, :, dh:dh + stride * (ho - 1) + 1:stride,
                                     dw:dw + stride * (wo - 1) + 1:stride])
        cols = jnp.concatenate(taps, axis=0).reshape(kh * kw * cin, b * ho * wo)
        w2 = w.transpose(0, 2, 3, 1).reshape(cout, kh * kw * cin)

    r2 = residual.reshape(cout, b * ho * wo) if residual is not None else None
    y = fused_gemm(w2, bias, cols, residual=r2, act=act, relu_out=relu_out)
    return y.reshape(cout, b, ho, wo)


# ---------------------------------------------------------------------------
# ResNetBlock / ResNetLayer (parameters + Pallas forward).
# ---------------------------------------------------------------------------
def init_conv_bn(key, cin, cout, k):
    kw_, kg, kb, km, kv = jax.random.split(key, 5)
    fan_in = cin * k * k
    return dict(
        w=jax.random.normal(kw_, (cout, cin, k, k), jnp.float32) / np.sqrt(fan_in),
        gamma=jax.random.uniform(kg, (cout,), jnp.float32, 0.5, 1.5),
        beta=0.1 * jax.random.normal(kb, (cout,), jnp.float32),
        mean=0.1 * jax.random.normal(km, (cout,), jnp.float32),
        var=jax.random.uniform(kv, (cout,), jnp.float32, 0.5, 1.5),
    )


def init_resnet_block(key, c1, c2, s=1, e=4):
    c3 = e * c2
    k1, k2, k3, k4 = jax.random.split(key, 4)
    params = dict(
        s=s,
        cv1=init_conv_bn(k1, c1, c2, 1),
        cv2=init_conv_bn(k2, c2, c2, 3),
        cv3=init_conv_bn(k3, c2, c3, 1),
    )
    if s != 1 or c1 != c3:
        params["shortcut"] = init_conv_bn(k4, c1, c3, 1)
    return params


def init_resnet_layer(key, c1, c2, s=1, is_first=False, n=1, e=4):
    if is_first:
        return dict(is_first=True, conv=init_conv_bn(key, c1, c2, 7))
    keys = jax.random.split(key, n)
    blocks = [init_resnet_block(keys[0], c1, c2, s, e)]
    blocks += [init_resnet_block(keys[i], e * c2, c2, 1, e) for i in range(1, n)]
    return dict(is_first=False, blocks=blocks)


def resnet_block_cbhw(x, p):
    s = p["s"]
    y = conv_bn_cbhw(x, p["cv1"], stride=1, act="silu")    # 1x1 Conv+BN+SiLU
    y = conv_bn_cbhw(y, p["cv2"], stride=s, act="silu")    # 3x3/s Conv+BN+SiLU
    sc = (conv_bn_cbhw(x, p["shortcut"], stride=s, act="none")
          if "shortcut" in p else x)
    # cv3 (1x1 Conv+BN, no act) + residual add + ReLU fused in one kernel.
    return conv_bn_cbhw(y, p["cv3"], stride=1, act="none",
                        residual=sc, relu_out=True)


def resnet_layer_pallas(x_nchw, params):
    # One NCHW -> (C, B, H, W) transpose at entry, one back at exit; all
    # intermediate activations stay lane-dense bf16.
    x = jnp.transpose(x_nchw, (1, 0, 2, 3)).astype(jnp.bfloat16)
    if params["is_first"]:
        y = conv_bn_cbhw(x, params["conv"], stride=2, act="silu")   # 7x7/2
        y = maxpool_3x3_s2_p1_cbhw(y)
    else:
        y = x
        for bp in params["blocks"]:
            y = resnet_block_cbhw(y, bp)
    return jnp.transpose(y, (1, 0, 2, 3)).astype(jnp.float32)


# ---------------------------------------------------------------------------
# Pure-JAX f32 reference (mirrors the PyTorch graph: Conv2d -> BN -> act).
# ---------------------------------------------------------------------------
def _conv_bn_act_ref(x, p, stride, pad, act):
    y = jax.lax.conv_general_dilated(
        x, p["w"], (stride, stride), [(pad, pad), (pad, pad)],
        dimension_numbers=("NCHW", "OIHW", "NCHW"), precision=_HIGHEST)
    scale = p["gamma"] / jnp.sqrt(p["var"] + BN_EPS)
    y = y * scale[None, :, None, None] \
        + (p["beta"] - p["mean"] * scale)[None, :, None, None]
    if act == "silu":
        y = y * jax.nn.sigmoid(y)
    return y


def _resnet_block_ref(x, p):
    s = p["s"]
    y = _conv_bn_act_ref(x, p["cv1"], 1, 0, "silu")
    y = _conv_bn_act_ref(y, p["cv2"], s, 1, "silu")
    y = _conv_bn_act_ref(y, p["cv3"], 1, 0, "none")
    sc = _conv_bn_act_ref(x, p["shortcut"], s, 0, "none") if "shortcut" in p else x
    return jnp.maximum(y + sc, 0.0)


def resnet_layer_ref(x, params):
    if params["is_first"]:
        y = _conv_bn_act_ref(x, params["conv"], 2, 3, "silu")
        return jax.lax.reduce_window(
            y, -jnp.inf, jax.lax.max,
            (1, 1, 3, 3), (1, 1, 2, 2), [(0, 0), (0, 0), (1, 1), (1, 1)])
    for bp in params["blocks"]:
        x = _resnet_block_ref(x, bp)
    return x


if __name__ == "__main__":
    root = jax.random.PRNGKey(0)
    kx1, kp1, kx2, kp2 = jax.random.split(root, 4)

    # Tolerance reflects bf16 MXU operands (f32 accumulation) through a
    # 7-conv-deep stack vs. the f32/HIGHEST reference.
    TOL = 5e-2

    # ResNetLayer(c1=16, c2=8, s=1, is_first=False, n=2, e=4):
    #   block 0 has a conv shortcut (c1 != e*c2), block 1 uses the identity.
    b, c1, h, w = 2, 16, 16, 16
    x = jax.random.normal(kx1, (b, c1, h, w), jnp.float32)
    params = init_resnet_layer(kp1, c1, 8, s=1, is_first=False, n=2, e=4)
    out = jax.block_until_ready(resnet_layer_pallas(x, params))
    ref = resnet_layer_ref(x, params)
    np.testing.assert_allclose(np.asarray(out), np.asarray(ref),
                               atol=TOL, rtol=TOL)

    # ResNetLayer(c1=3, c2=8, is_first=True): 7x7/2 Conv+BN+SiLU + MaxPool(3,2,1).
    x2 = jax.random.normal(kx2, (b, 3, h, w), jnp.float32)
    params2 = init_resnet_layer(kp2, 3, 8, is_first=True)
    out2 = jax.block_until_ready(resnet_layer_pallas(x2, params2))
    ref2 = resnet_layer_ref(x2, params2)
    np.testing.assert_allclose(np.asarray(out2), np.asarray(ref2),
                               atol=TOL, rtol=TOL)

    print("KERNEL_OK")
</pallas_src>

<mosaic_0001>
module attributes {stable_mosaic.version = 11 : i64} {
  func.func @kernel(%arg0: i32, %arg1: i32, %arg2: memref<16x16xbf16, #tpu.memory_space<vmem>>, %arg3: memref<16x1xf32, #tpu.memory_space<vmem>>, %arg4: memref<16x256xbf16, #tpu.memory_space<vmem>>, %arg5: memref<16x256xbf16, #tpu.memory_space<vmem>>, %arg6: memref<16x256xf32, #tpu.memory_space<vmem>>) attributes {dimension_semantics = [#tpu.dimension_semantics<parallel>, #tpu.dimension_semantics<arbitrary>], iteration_bounds = array<i64: 2, 1>, scalar_prefetch = 0 : i64, scratch_operands = 1 : i64, tpu.core_type = #tpu.core_type<tc>, window_params = [{transform_indices = @transform_0, window_bounds = array<i64: 16, 16>}, {pipeline_mode = #tpu.pipeline_mode<synchronous>, transform_indices = @transform_1, window_bounds = array<i64: 16, 1>}, {transform_indices = @transform_2, window_bounds = array<i64: 16, 256>}, {transform_indices = @transform_3, window_bounds = array<i64: 16, 256>}]} {
    %c0_i32 = arith.constant 0 : i32
    %0 = arith.cmpi eq, %arg1, %c0_i32 : i32
    %1 = arith.extui %0 : i1 to i32
    %c0_i32_0 = arith.constant 0 : i32
    %2 = arith.cmpi ne, %1, %c0_i32_0 : i32
    scf.if %2 {
      %cst_10 = arith.constant 0.000000e+00 : f32
      %12 = vector.broadcast %cst_10 : f32 to vector<16x256xf32>
      %c0_11 = arith.constant 0 : index
      %c0_12 = arith.constant 0 : index
      %13 = vector.load %arg6[%c0_11, %c0_12] : memref<16x256xf32, #tpu.memory_space<vmem>>, vector<16x256xf32>
      tpu.vector_store %arg6[%c0_11, %c0_12], %12 {strides = array<i32>} : memref<16x256xf32, #tpu.memory_space<vmem>>, vector<16x256xf32>,
    } else {
    }
    %c0 = arith.constant 0 : index
    %c0_1 = arith.constant 0 : index
    %3 = vector.load %arg6[%c0, %c0_1] : memref<16x256xf32, #tpu.memory_space<vmem>>, vector<16x256xf32>
    %c0_2 = arith.constant 0 : index
    %c0_3 = arith.constant 0 : index
    %4 = vector.load %arg2[%c0_2, %c0_3] : memref<16x16xbf16, #tpu.memory_space<vmem>>, vector<16x16xbf16>
    %c0_4 = arith.constant 0 : index
    %c0_5 = arith.constant 0 : index
    %5 = vector.load %arg4[%c0_4, %c0_5] : memref<16x256xbf16, #tpu.memory_space<vmem>>, vector<16x256xbf16>
    %cst = arith.constant dense<0.000000e+00> : vector<16x256xf32>
    %6 = tpu.matmul %4, %5, %cst {dimension_numbers = #tpu.dot_dimension_numbers<[1], [0], [0], [1], [0, 0, 1, 1], [], []>} : vector<16x16xbf16>, vector<16x256xbf16>, vector<16x256xf32> -> vector<16x256xf32>
    %7 = arith.addf %3, %6 : vector<16x256xf32>
    %c0_6 = arith.constant 0 : index
    %c0_7 = arith.constant 0 : index
    %8 = vector.load %arg6[%c0_6, %c0_7] : memref<16x256xf32, #tpu.memory_space<vmem>>, vector<16x256xf32>
    tpu.vector_store %arg6[%c0_6, %c0_7], %7 {strides = array<i32>} : memref<16x256xf32, #tpu.memory_space<vmem>>, vector<16x256xf32>,
    %c0_i32_8 = arith.constant 0 : i32
    %9 = arith.cmpi eq, %arg1, %c0_i32_8 : i32
    %10 = arith.extui %9 : i1 to i32
    %c0_i32_9 = arith.constant 0 : i32
    %11 = arith.cmpi ne, %10, %c0_i32_9 : i32
    scf.if %11 {
      %c0_10 = arith.constant 0 : index
      %c0_11 = arith.constant 0 : index
      %12 = vector.load %arg6[%c0_10, %c0_11] : memref<16x256xf32, #tpu.memory_space<vmem>>, vector<16x256xf32>
      %c0_12 = arith.constant 0 : index
      %c0_13 = arith.constant 0 : index
      %13 = vector.load %arg3[%c0_12, %c0_13] : memref<16x1xf32, #tpu.memory_space<vmem>>, vector<16x1xf32>
      %14 = vector.broadcast %13 : vector<16x1xf32> to vector<16x256xf32>
      %15 = arith.addf %12, %14 : vector<16x256xf32>
      %cst_14 = arith.constant 0.000000e+00 : f32
      %16 = vector.broadcast %cst_14 : f32 to vector<16x256xf32>
      %17 = arith.subf %16, %15 : vector<16x256xf32>
      %18 = math.exp %17 : vector<16x256xf32>
      %cst_15 = arith.constant 1.000000e+00 : f32
      %19 = vector.broadcast %cst_15 : f32 to vector<16x256xf32>
      %20 = arith.addf %19, %18 : vector<16x256xf32>
      %21 = tpu.reciprocal %20 {approx = true} : vector<16x256xf32> -> vector<16x256xf32>
      %22 = arith.mulf %15, %21 : vector<16x256xf32>
      %23 = arith.truncf %22 : vector<16x256xf32> to vector<16x256xbf16>
      %c0_16 = arith.constant 0 : index
      %c0_17 = arith.constant 0 : index
      %24 = vector.load %arg5[%c0_16, %c0_17] : memref<16x256xbf16, #tpu.memory_space<vmem>>, vector<16x256xbf16>
      tpu.vector_store %arg5[%c0_16, %c0_17], %23 {strides = array<i32>} : memref<16x256xbf16, #tpu.memory_space<vmem>>, vector<16x256xbf16>,
    } else {
    }
    return
  }
  func.func @transform_0(%arg0: i32, %arg1: i32) -> (i32, i32) {
    %c0_i32 = arith.constant 0 : i32
    %c0_i32_0 = arith.constant 0 : i32
    return %c0_i32, %arg1 : i32, i32
  }
  func.func @transform_1(%arg0: i32, %arg1: i32) -> (i32, i32) {
    %c0_i32 = arith.constant 0 : i32
    %c0_i32_0 = arith.constant 0 : i32
    %c0_i32_1 = arith.constant 0 : i32
    return %c0_i32, %c0_i32_0 : i32, i32
  }
  func.func @transform_2(%arg0: i32, %arg1: i32) -> (i32, i32) {
    %c0_i32 = arith.constant 0 : i32
    return %arg1, %arg0 : i32, i32
  }
  func.func @transform_3(%arg0: i32, %arg1: i32) -> (i32, i32) {
    %c0_i32 = arith.constant 0 : i32
    %c0_i32_0 = arith.constant 0 : i32
    return %c0_i32, %arg0 : i32, i32
  }
}

</mosaic_0001>

<llo_original>
// kernel: tpu_custom_call.1
$region0: #{tpu_custom_call.1}
  #allocation0 [shape = 'u32[]', space=smem, size = 0x4, offset = 0x4, fixed_abs, tag = 'smem constant byte address 0x4 - core index']
  #allocation1 [shape = 'u32[72,128]{1,0:T(1,128)}', space=vmem, size = 0x9000, scoped, tag = 'internal scratch']
  #allocation2 [shape = 'f32[16,256]{1,0:T(8,128)}', space=vmem, size = 0x4000, scoped, tag = 'scratch operand']
  %s0 = inlined_call_operand.vmem [shape: bf16[16,16], index: 0, kind: input, shape index: {}]
  %s1 = inlined_call_operand.vmem [shape: f32[16,1], index: 1, kind: input, shape index: {}]
  %s2 = inlined_call_operand.hbm [shape: bf16[16,512], index: 2, kind: input, shape index: {}]
  %s3 = inlined_call_operand.hbm [shape: bf16[16,512], index: 3, kind: output, shape index: {}]
  %s4 = sld [smem:[#allocation0]]
  $region57: #{tpu_custom_call.1} parent=0
    _
  %s6 = ssub.s32 1, %s4
  %s7 = scalar_select 0, %s6, %s4
  $region1: #{tpu_custom_call.1} parent=0
    #allocation3 [shape = 'u8[16384]{0}', space=vmem, size = 0x4000, scoped, tag = 'input window, operand 2']
    #allocation4 [shape = 's32[2]{0}', space=sflag, size = 0x8, scoped, tag = 'scoped memory for tpu_custom_call.1']
    #allocation5 [shape = 's32[2]{0}', space=sflag, size = 0x8, scoped, tag = 'scoped memory for tpu_custom_call.1']
    #allocation6 [shape = 'u8[16384]{0}', space=vmem, size = 0x4000, scoped, tag = 'output window, operand 0']
    %8 = vsyncpa [#allocation4], 0
    %s9 = scalar_lea.sflag [#allocation4], 1
    %10 = vsyncpa %s9, 0
    %11 = vsyncpa [#allocation5], 0
    %s12 = scalar_lea.sflag [#allocation5], 1
    %13 = vsyncpa %s12, 0
    loop: start=0, step=1, limit=4
    $region2: #{tpu_custom_call.1} parent=1 // loop_pre_header
      _
    $region3: #{tpu_custom_call.1} parent=1 // loop_header
      %s15 = sphi 0, %s19
      %p16 = scmp.ge.s32.totalorder %s15, 4
      %s22 = sphi 0, %s34
      %s23 = sphi 0, %s30
      %s24 = sphi 0, %s22
      %s25 = sphi 0, %s23
      %s26 = sphi 0, %s24
      %s27 = sphi 0, %s25
      %s37 = sphi 0, %s39
      %s40 = sphi 0, %s37
      %s41 = sphi 0, %s40
      %s57 = sphi 0, %s41
      %s61 = sphi 0, %s61
      %s63 = sphi 0, %s61
      %s64 = sphi 0, %s63
      %s78 = sphi 0, %s64
      %s86 = sphi 0, %s88
      %s89 = sphi 0, %s86
      %s90 = sphi 0, %s89
      %s106 = sphi 0, %s90
      %s112 = sphi 0, %s114
      %s115 = sphi 0, %s112
      %s116 = sphi 0, %s115
      %s132 = sphi 0, %s116
    $region4: #{tpu_custom_call.1} parent=1 // loop_header_branch
      %18 = sbr.rel (%p16) target = $region8
    $region5: #{tpu_custom_call.1} parent=1 // loop_body
      %s20 = ssub.s32 %s15, 1
      %s21 = ssub.s32 %s15, 2
      %s28 = sadd.s32 1, %s23
      %p29 = scmp.ge.s32.totalorder %s28, 1
      %s30 = scalar_select %p29, 0, %s28
      %s31 = sadd.s32 1, %s22
      %s32 = scalar_select %p29, %s31, %s22
      %p33 = scmp.ge.s32.totalorder %s32, 2
      %s34 = scalar_select %p33, 0, %s32
      %s35 = ssub.s32 %s23, %s30
      %p36 = scmp.eq.s32.totalorder %s35, 0
      %s38 = sadd.s32 %s37, 1
      %s39 = scalar_select %p36, %s37, %s38
      %p42 = pneg %p36
      %p43 = scmp.eq.s32.totalorder %s15, 1
      %p44 = por %p42, %p43
      %p45 = scmp.ne.s32.totalorder %s37, %s40
      %p46 = scmp.eq.s32.totalorder %s15, 0
      %p47 = por %p45, %p46
      %p48 = scmp.ne.s32.totalorder %s37, %s40
      %p49 = scmp.eq.s32.totalorder %s20, 1
      %p50 = por %p48, %p49
      %p51 = scmp.ne.s32.totalorder %s40, %s41
      %p52 = scmp.eq.s32.totalorder %s20, 0
      %p53 = por %p51, %p52
      %p54 = scmp.ne.s32.totalorder %s40, %s41
      %p55 = scmp.eq.s32.totalorder %s21, 1
      %p56 = por %p54, %p55
      %p58 = scmp.ne.s32.totalorder %s41, %s57
      %p59 = scmp.eq.s32.totalorder %s21, 0
      %p60 = por %p58, %p59
      %s62 = sadd.s32 %s61, 1
      %p65 = scmp.eq.s32.totalorder %s15, 1
      %p66 = scmp.ne.s32.totalorder %s61, %s63
      %p67 = scmp.eq.s32.totalorder %s15, 0
      %p68 = por %p66, %p67
      %p69 = scmp.ne.s32.totalorder %s61, %s63
      %p70 = scmp.eq.s32.totalorder %s20, 1
      %p71 = por %p69, %p70
      %p72 = scmp.ne.s32.totalorder %s63, %s64
      %p73 = scmp.eq.s32.totalorder %s20, 0
      %p74 = por %p72, %p73
      %p75 = scmp.ne.s32.totalorder %s63, %s64
      %p76 = scmp.eq.s32.totalorder %s21, 1
      %p77 = por %p75, %p76
      %p79 = scmp.ne.s32.totalorder %s64, %s78
      %p80 = scmp.eq.s32.totalorder %s21, 0
      %p81 = por %p79, %p80
      %s82 = ssub.s32 %s23, %s30
      %s83 = ssub.s32 %s22, %s34
      %s84 = sor.u32 %s82, %s83
      %p85 = scmp.eq.s32.totalorder %s84, 0
      %s87 = sadd.s32 %s86, 1
      %s88 = scalar_select %p85, %s86, %s87
      %p91 = pneg %p85
      %p92 = scmp.eq.s32.totalorder %s15, 1
      %p93 = por %p91, %p92
      %p94 = scmp.ne.s32.totalorder %s86, %s89
      %p95 = scmp.eq.s32.totalorder %s15, 0
      %p96 = por %p94, %p95
      %p97 = scmp.ne.s32.totalorder %s86, %s89
      %p98 = scmp.eq.s32.totalorder %s20, 1
      %p99 = por %p97, %p98
      %p100 = scmp.ne.s32.totalorder %s89, %s90
      %p101 = scmp.eq.s32.totalorder %s20, 0
      %p102 = por %p100, %p101
      %p103 = scmp.ne.s32.totalorder %s89, %s90
      %p104 = scmp.eq.s32.totalorder %s21, 1
      %p105 = por %p103, %p104
      %p107 = scmp.ne.s32.totalorder %s90, %s106
      %p108 = scmp.eq.s32.totalorder %s21, 0
      %p109 = por %p107, %p108
      %s110 = ssub.s32 %s22, %s34
      %p111 = scmp.eq.s32.totalorder %s110, 0
      %s113 = sadd.s32 %s112, 1
      %s114 = scalar_select %p111, %s112, %s113
      %p117 = pneg %p111
      %p118 = scmp.eq.s32.totalorder %s15, 1
      %p119 = por %p117, %p118
      %p120 = scmp.ne.s32.totalorder %s112, %s115
      %p121 = scmp.eq.s32.totalorder %s15, 0
      %p122 = por %p120, %p121
      %p123 = scmp.ne.s32.totalorder %s112, %s115
      %p124 = scmp.eq.s32.totalorder %s20, 1
      %p125 = por %p123, %p124
      %p126 = scmp.ne.s32.totalorder %s115, %s116
      %p127 = scmp.eq.s32.totalorder %s20, 0
      %p128 = por %p126, %p127
      %p129 = scmp.ne.s32.totalorder %s115, %s116
      %p130 = scmp.eq.s32.totalorder %s21, 1
      %p131 = por %p129, %p130
      %p133 = scmp.ne.s32.totalorder %s116, %s132
      %p134 = scmp.eq.s32.totalorder %s21, 0
      %p135 = por %p133, %p134
      %p136 = scmp.le.s32.totalorder 1, %s15
      %p137 = scmp.lt.s32.totalorder %s15, 3
      %p138 = pnand %p136, %p137
      %p139 = pneg %p138
      // Predicated region
      $region9: #{tpu_custom_call.1} parent=5 // pred_check
        _
      $region10: #{tpu_custom_call.1} parent=5 // pred_check_branch
        %141 = sbr.rel (%p138) target = $region12
      $region11: #{tpu_custom_call.1} parent=5 // pred_region
        %s142 = ssub.s32 %s15, 1
        // Predicated region
        $region13: #{tpu_custom_call.1} parent=11 // pred_check
          %p143 = pneg %p53
        $region14: #{tpu_custom_call.1} parent=11 // pred_check_branch
          %145 = sbr.rel (%p143) target = $region16
        $region15: #{tpu_custom_call.1} parent=11 // pred_region
          %p146 = scmp.lt.s32.totalorder %s25, 0
          %s147 = scalar_select %p146, %s25, 0
          %s148 = smul.addr %s147, 4
          %s149 = scalar_lea.vmem %s0, %s148
        $region16: #{tpu_custom_call.1} parent=11 // pred_fallthru
          _
        // Predicated region
        $region17: #{tpu_custom_call.1} parent=11 // pred_check
          %p150 = pneg %p74
        $region18: #{tpu_custom_call.1} parent=11 // pred_check_branch
          %152 = sbr.rel (%p150) target = $region20
        $region19: #{tpu_custom_call.1} parent=11 // pred_region
          _
        $region20: #{tpu_custom_call.1} parent=11 // pred_fallthru
          _
      $region12: #{tpu_custom_call.1} parent=5 // pred_fallthru
        _
      %p153 = scmp.lt.s32.totalorder %s15, 2
      // Predicated region
      $region21: #{tpu_custom_call.1} parent=5 // pred_check
        %p154 = pneg %p153
      $region22: #{tpu_custom_call.1} parent=5 // pred_check_branch
        %156 = sbr.rel (%p154) target = $region24
      $region23: #{tpu_custom_call.1} parent=5 // pred_region
        // Predicated region
        $region25: #{tpu_custom_call.1} parent=23 // pred_check
          %p157 = pneg %p96
        $region26: #{tpu_custom_call.1} parent=23 // pred_check_branch
          %159 = sbr.rel (%p157) target = $region28
        $region27: #{tpu_custom_call.1} parent=23 // pred_region
          %s160 = sand.u32 %s86, 1
          %s161 = scalar_lea.sflag [#allocation4], %s160
          %s162 = sand.u32 %s86, 1
          %s163 = smul.addr %s162, 16
          %s164 = scalar_lea.vmem [#allocation3], %s163
          %s165 = smul.u32 2, %s23
          %s166 = smul.u32 2, %s22
          %168 = vsyncadd %s161, 0
          %s169 = smul.addr %s165, 4
          %s170 = sadd.s32 %s166, %s169
          %s171 = smul.addr %s170, 4
          %s172 = scalar_lea.hbm %s2, %s171
          %s173 = sshll.u32 %s172, 4
          %s174 = int_to_ptr.hbm [resolvable:$true] %s173
          %s175 = sshll.u32 %s164, 4
          %s176 = int_to_ptr.vmem [resolvable:$true] %s175
          %181 = dma.hbm_to_vmem [thread:$0]  %s174, 256, %s176, %s161, 256, 128, 8
        $region28: #{tpu_custom_call.1} parent=23 // pred_fallthru
          _
      $region24: #{tpu_custom_call.1} parent=5 // pred_fallthru
        _
      %p182 = scmp.le.s32.totalorder 1, %s15
      %p183 = scmp.lt.s32.totalorder %s15, 3
      %p184 = pnand %p182, %p183
      %p185 = pneg %p184
      // Predicated region
      $region29: #{tpu_custom_call.1} parent=5 // pred_check
        _
      $region30: #{tpu_custom_call.1} parent=5 // pred_check_branch
        %187 = sbr.rel (%p184) target = $region32
      $region31: #{tpu_custom_call.1} parent=5 // pred_region
        %s188 = ssub.s32 %s15, 1
        %s189 = sand.u32 %s89, 1
        %s190 = scalar_lea.sflag [#allocation4], %s189
        %s191 = sand.u32 %s89, 1
        %s192 = smul.addr %s191, 16
        %s193 = scalar_lea.vmem [#allocation3], %s192
        // Predicated region
        $region33: #{tpu_custom_call.1} parent=31 // pred_check
          %p194 = pneg %p102
        $region34: #{tpu_custom_call.1} parent=31 // pred_check_branch
          %196 = sbr.rel (%p194) target = $region36
        $region35: #{tpu_custom_call.1} parent=31 // pred_region
          %198 = dma.done %s190, 256
        $region36: #{tpu_custom_call.1} parent=31 // pred_fallthru
          _
        %p199 = scmp.lt.s32.totalorder %s25, 0
        %s200 = scalar_select %p199, %s25, 0
        %s201 = smul.addr %s200, 4
        %s202 = scalar_lea.vmem %s0, %s201
        %p203 = pneg %p53
        %p204 = pneg %p50
        %p205 = pneg %p74
        %p206 = pneg %p71
        %s207 = sand.u32 %s89, 1
        %s208 = scalar_lea.sflag [#allocation4], %s207
        %s209 = sand.u32 %s89, 1
        %s210 = smul.addr %s209, 16
        %s211 = scalar_lea.vmem [#allocation3], %s210
        %p212 = pneg %p102
        %p213 = pneg %p99
        %p214 = pneg %p128
        %p215 = pneg %p125
        %s216 = sand.u32 %s115, 1
        %s217 = scalar_lea.sflag [#allocation5], %s216
        %s218 = sand.u32 %s115, 1
        %s219 = smul.addr %s218, 16
        %s220 = scalar_lea.vmem [#allocation6], %s219
        %p221 = scmp.lt.s32.totalorder %s25, 0
        %s222 = scalar_select %p221, %s25, 0
        %s223 = smul.addr %s222, 4
        %s224 = scalar_lea.vmem %s0, %s223
        %s225 = smul.u32 2, %s25
        %s226 = smul.u32 2, %s24
        %s227 = smul.u32 2, %s24
        %p229 = scmp.eq.s32.totalorder %s25, 0
        // Predicated region
        $region37: #{tpu_custom_call.1} parent=31 // pred_check
          %p230 = pneg %p229
        $region38: #{tpu_custom_call.1} parent=31 // pred_check_branch
          %232 = sbr.rel (%p230) target = $region40
        $region39: #{tpu_custom_call.1} parent=31 // pred_region
          %233 = vst [vmem:[#allocation2] sm:$0xff] 0.0
          %234 = vst [vmem:[#allocation2 + $0x8] sm:$0xff] 0.0
          %235 = vst [vmem:[#allocation2 + $0x10] sm:$0xff] 0.0
          %236 = vst [vmem:[#allocation2 + $0x18] sm:$0xff] 0.0
        $region40: #{tpu_custom_call.1} parent=31 // pred_fallthru
          _
        %v237 = vld [vmem:[#allocation2] sm:$0xff]
        %v238 = vld [vmem:[#allocation2 + $0x8] sm:$0xff]
        %v239 = vld [vmem:[#allocation2 + $0x10] sm:$0xff]
        %v240 = vld [vmem:[#allocation2 + $0x18] sm:$0xff]
        %v241 = vld [vmem:[%s224] sm:$0xf]
        %v242 = vld [vmem:[%s224 + $0x4] sm:$0xf]
        %v243 = vld [vmem:[%s193] sm:$0xff]
        %v244 = vld [vmem:[%s193 + $0x8] sm:$0xff]
        %v247 = vunpack.c.l.b16 %v241
        %v248 = vunpack.c.l.b16 %v242
        %v249 = vpack.c.b16 %v248, %v247
        %v252 = vunpack.c.l.b16 %v243
        %v253 = vunpack.c.h.b16 %v243
        %v254 = vunpack.c.l.b16 %v244
        %v255 = vunpack.c.h.b16 %v244
        %v256 = vpack.c.b16 %v254, %v252
        %v257 = vpack.c.b16 %v255, %v253
        %vm260 = vcmask 130048
        %v262 = vsel %vm260, %v249, 0
        %264 = vmatpush.bf16.msra.mxu0 0
        %265 = vmatpush.bf16.msra.mxu0 0
        %266 = vmatpush.bf16.msra.mxu0 0
        %267 = vmatpush.bf16.msra.mxu0 0
        %268 = vmatpush.bf16.msra.mxu0 0
        %269 = vmatpush.bf16.msra.mxu0 0
        %270 = vmatpush.bf16.msra.mxu0 0
        %271 = vmatpush.bf16.msra.mxu0 %v256
        %272 = vmatmul.bf16.gmra.mxu0 %v262
        %v273 = vpop.f32.mrf.mxu0
        %v274 = vadd.f32 0.0, %v273
        %v275 = vpop.f32.mrf.mxu0
        %v276 = vadd.f32 0.0, %v275
        %277 = vdwg.mxu0
        %278 = vmatpush.bf16.msra.mxu0 0
        %279 = vmatpush.bf16.msra.mxu0 0
        %280 = vmatpush.bf16.msra.mxu0 0
        %281 = vmatpush.bf16.msra.mxu0 0
        %282 = vmatpush.bf16.msra.mxu0 0
        %283 = vmatpush.bf16.msra.mxu0 0
        %284 = vmatpush.bf16.msra.mxu0 0
        %285 = vmatpush.bf16.msra.mxu0 %v257
        %286 = vmatmul.bf16.gmra.mxu0 %v262
        %v287 = vpop.f32.mrf.mxu0
        %v288 = vadd.f32 0.0, %v287
        %v289 = vpop.f32.mrf.mxu0
        %v290 = vadd.f32 0.0, %v289
        %291 = vdwg.mxu0
        %v292 = vadd.f32 %v237, %v274
        %v293 = vadd.f32 %v238, %v288
        %v294 = vadd.f32 %v239, %v276
        %v295 = vadd.f32 %v240, %v290
        %296 = vst [vmem:[#allocation2] sm:$0xff] %v292
        %297 = vst [vmem:[#allocation2 + $0x8] sm:$0xff] %v293
        %298 = vst [vmem:[#allocation2 + $0x10] sm:$0xff] %v294
        %299 = vst [vmem:[#allocation2 + $0x18] sm:$0xff] %v295
        // Predicated region
        $region41: #{tpu_custom_call.1} parent=31 // pred_check
          %p300 = pneg %p229
        $region42: #{tpu_custom_call.1} parent=31 // pred_check_branch
          %302 = sbr.rel (%p300) target = $region44
        $region43: #{tpu_custom_call.1} parent=31 // pred_region
          %v303 = vld [vmem:[#allocation2] sm:$0xff]
          %v304 = vld [vmem:[#allocation2 + $0x8] sm:$0xff]
          %v305 = vld [vmem:[#allocation2 + $0x10] sm:$0xff]
          %v306 = vld [vmem:[#allocation2 + $0x18] sm:$0xff]
          %v307 = vld [vmem:[%s1] sm:$0xff]
          %v308 = vld [vmem:[%s1 + $0x8] sm:$0xff]
          %310 = vset.pattern.permute.xlu0 0
          %311 = vperm.xlu0 %310, %v307
          %v312 = vpop.permute.xlu0 %311
          %315 = vset.pattern.permute.xlu0 0
          %316 = vperm.xlu0 %315, %v308
          %v317 = vpop.permute.xlu0 %316
          %v319 = vadd.f32 %v303, %v312
          %v320 = vadd.f32 %v304, %v312
          %v321 = vadd.f32 %v305, %v317
          %v322 = vadd.f32 %v306, %v317
          %v323 = vsub.f32 0.0, %v319
          %v324 = vsub.f32 0.0, %v320
          %v325 = vsub.f32 0.0, %v321
          %v326 = vsub.f32 0.0, %v322
          %v327 = vmul.f32 %v323, 1.442695
          %v328 = vpow.pop %v327
          %v329 = vmul.f32 %v324, 1.442695
          %v330 = vpow.pop %v329
          %v331 = vmul.f32 %v325, 1.442695
          %v332 = vpow.pop %v331
          %v333 = vmul.f32 %v326, 1.442695
          %v334 = vpow.pop %v333
          %v335 = vadd.f32 %v328, 1.0
          %v336 = vadd.f32 %v330, 1.0
          %v337 = vadd.f32 %v332, 1.0
          %v338 = vadd.f32 %v334, 1.0
          %v339 = vrcp.pop %v335
          %v340 = vrcp.pop %v336
          %v341 = vrcp.pop %v337
          %v342 = vrcp.pop %v338
          %v343 = vmul.f32 %v319, %v339
          %v344 = vmul.f32 %v320, %v340
          %v345 = vmul.f32 %v321, %v341
          %v346 = vmul.f32 %v322, %v342
          %v347 = vpack.c.bf16 %v344, %v343
          %v348 = vpack.c.bf16 %v346, %v345
          %349 = vst [vmem:[%s220] sm:$0xff] %v347
          %350 = vst [vmem:[%s220 + $0x8] sm:$0xff] %v348
        $region44: #{tpu_custom_call.1} parent=31 // pred_fallthru
          _
        %s351 = sand.u32 %s115, 1
        %s352 = scalar_lea.sflag [#allocation5], %s351
        %s353 = sand.u32 %s115, 1
        %s354 = smul.addr %s353, 16
        %s355 = scalar_lea.vmem [#allocation6], %s354
        // Predicated region
        $region45: #{tpu_custom_call.1} parent=31 // pred_check
          %p356 = pneg %p125
        $region46: #{tpu_custom_call.1} parent=31 // pred_check_branch
          %358 = sbr.rel (%p356) target = $region48
        $region47: #{tpu_custom_call.1} parent=31 // pred_region
          %s359 = smul.u32 2, %s24
          %361 = vsyncadd %s352, 0
          %s362 = smul.addr %s359, 4
          %s363 = scalar_lea.hbm %s3, %s362
          %s364 = sshll.u32 %s355, 4
          %s365 = int_to_ptr.vmem [resolvable:$true] %s364
          %s366 = sshll.u32 %s363, 4
          %s367 = int_to_ptr.hbm [resolvable:$true] %s366
          %372 = dma.vmem_to_hbm [thread:$0]  %s365, 256, %s367, %s352, 128, 256, 8
        $region48: #{tpu_custom_call.1} parent=31 // pred_fallthru
          _
      $region32: #{tpu_custom_call.1} parent=5 // pred_fallthru
        _
      %p373 = scmp.le.s32.totalorder 2, %s15
      // Predicated region
      $region49: #{tpu_custom_call.1} parent=5 // pred_check
        %p374 = pneg %p373
      $region50: #{tpu_custom_call.1} parent=5 // pred_check_branch
        %376 = sbr.rel (%p374) target = $region52
      $region51: #{tpu_custom_call.1} parent=5 // pred_region
        %s377 = ssub.s32 %s15, 2
        // Predicated region
        $region53: #{tpu_custom_call.1} parent=51 // pred_check
          %p378 = pneg %p131
        $region54: #{tpu_custom_call.1} parent=51 // pred_check_branch
          %380 = sbr.rel (%p378) target = $region56
        $region55: #{tpu_custom_call.1} parent=51 // pred_region
          %s381 = sand.u32 %s116, 1
          %s382 = scalar_lea.sflag [#allocation5], %s381
          %s383 = sand.u32 %s116, 1
          %s384 = smul.addr %s383, 16
          %s385 = scalar_lea.vmem [#allocation6], %s384
          %387 = dma.done %s382, 256
        $region56: #{tpu_custom_call.1} parent=51 // pred_fallthru
          _
      $region52: #{tpu_custom_call.1} parent=5 // pred_fallthru
        _
    $region6: #{tpu_custom_call.1} parent=1 // loop_footer
      %s19 = sadd.s32 1, %s15
    $region7: #{tpu_custom_call.1} parent=1 // loop_footer_branch
      %14 = sbr.rel target = $region3
    $region8: #{tpu_custom_call.1} parent=1 // loop_exit
      _
    %388 = vsyncpa [#allocation4], 1
    %s389 = scalar_lea.sflag [#allocation4], 1
    %390 = vsyncpa %s389, 1
    %391 = vsyncpa [#allocation5], 1
    %s392 = scalar_lea.sflag [#allocation5], 1
    %393 = vsyncpa %s392, 1

</llo_original>
